<compile_context>
chip_gen: v5e
topology: v5e:2x2
jax: 0.10.0
libtpu: 0.0.40
codegen_flags: <defaults>
</compile_context>

<pallas_src>
import functools

import jax
import jax.numpy as jnp
from jax.experimental import pallas as pl
from jax.experimental.pallas import tpu as pltpu


_LANE = 512        # lane-dense slab width (multiple of 128)
_TILE_ROWS = 1024  # 1024 x 512 x 4B = 2 MiB per f32 buffer

# Hash constants (golden ratio seed-mix + lowbias32 multipliers).
_C0 = 0x9E3779B1
_C1 = 0x7FEB352D
_C2 = 0x846CA68B


def _i32(v: int) -> jnp.int32:
    """Python int -> int32 constant with two's-complement wrap for values >= 2**31."""
    v &= 0xFFFFFFFF
    if v >= 1 << 31:
        v -= 1 << 32
    return jnp.int32(v)


def _dropout_kernel(seed_ref, x_ref, o_ref, *, rate: float):
    """Inverted dropout: zero with prob `rate`, scale survivors by 1/(1-rate)."""
    tile_rows, lane = x_ref.shape
    pid = pl.program_id(0)

    # Global flat element index inside the padded (rows, lane) slab.
    row = jax.lax.broadcasted_iota(jnp.int32, (tile_rows, lane), 0)
    col = jax.lax.broadcasted_iota(jnp.int32, (tile_rows, lane), 1)
    flat = (pid * tile_rows + row) * lane + col  # wraps for huge inputs; fine for hashing

    # Counter-based hash PRNG (lowbias32 finalizer), seeded with the user seed.
    # Pure int32 VPU ops: runs on real TPUs and in interpret mode, and the flat index
    # already contains program_id so every tile draws an independent mask.
    sh16 = jnp.int32(16)
    sh15 = jnp.int32(15)
    h = flat + seed_ref[0] * _i32(_C0)
    h = h ^ jax.lax.shift_right_logical(h, sh16)
    h = h * _i32(_C1)
    h = h ^ jax.lax.shift_right_logical(h, sh15)
    h = h * _i32(_C2)
    h = h ^ jax.lax.shift_right_logical(h, sh16)
    r = jax.lax.shift_right_logical(h, jnp.int32(8))  # uniform in [0, 2^24)

    threshold = int(round(rate * (1 << 24)))          # drop iff r < threshold
    keep = r >= jnp.int32(threshold)

    x = x_ref[...]
    scale = jnp.asarray(1.0 / (1.0 - rate), dtype=x.dtype)  # native dtype, no f32 round-trip
    o_ref[...] = jnp.where(keep, x * scale, jnp.zeros_like(x))


def gnn_dropout(inp, *, rate: float, seed: int, training: bool = True):
    """Pallas equivalent of GNNDropout.forward.

    inp: tuple (x, edge_index, edge_type)
    Returns (dropout(x), edge_index, edge_type).
    """
    x, edge_index, edge_type = inp

    if (not training) or rate <= 0.0:
        # nn.Dropout is identity in eval mode / p == 0.
        return (x, edge_index, edge_type)
    if rate >= 1.0:
        # p == 1 zeroes everything.
        return (jnp.zeros_like(x), edge_index, edge_type)

    # TODO(synk): for sub-VMEM-sized x (like the toy example) fuse dropout into the
    # adjacent GNN matmul kernel instead of paying a standalone pallas_call launch.

    orig_shape = x.shape
    total = x.size

    # Lane-dense slab: flatten + pad to a multiple of 512 lanes.
    padded_total = pl.cdiv(total, _LANE) * _LANE
    flat = x.reshape(-1)
    if padded_total != total:
        flat = jnp.pad(flat, (0, padded_total - total))
    rows = padded_total // _LANE
    slab = flat.reshape(rows, _LANE)

    if rows <= _TILE_ROWS:
        tile_rows, grid = rows, (1,)                      # single block fast path
    else:
        tile_rows, grid = _TILE_ROWS, (pl.cdiv(rows, _TILE_ROWS),)

    seed_arr = jnp.array([seed], dtype=jnp.int32)

    out = pl.pallas_call(
        functools.partial(_dropout_kernel, rate=rate),
        out_shape=jax.ShapeDtypeStruct((rows, _LANE), x.dtype),
        grid_spec=pltpu.PrefetchScalarGridSpec(
            num_scalar_prefetch=1,
            grid=grid,
            in_specs=[pl.BlockSpec((tile_rows, _LANE), lambda i, seed_ref: (i, 0))],
            out_specs=pl.BlockSpec((tile_rows, _LANE), lambda i, seed_ref: (i, 0)),
        ),
        compiler_params=pltpu.CompilerParams(
            # Row tiles are independent -> shard across TCs (2x on v7x dual-TC).
            dimension_semantics=("parallel",),
        ),
    )(seed_arr, slab)

    out_x = out.reshape(-1)[:total].reshape(orig_shape)
    return (out_x, edge_index, edge_type)


if __name__ == "__main__":
    # Deterministic small example consistent with a GNN input:
    # x: (num_nodes=8, hidden=32), edge_index: (2, num_edges=16), edge_type: (16,)
    key = jax.random.PRNGKey(0)
    kx, ke, kt = jax.random.split(key, 3)

    num_nodes, hidden, num_edges = 8, 32, 16
    x = jax.random.normal(kx, (num_nodes, hidden), dtype=jnp.float32)
    edge_index = jax.random.randint(ke, (2, num_edges), 0, num_nodes, dtype=jnp.int32)
    edge_type = jax.random.randint(kt, (num_edges,), 0, 4, dtype=jnp.int32)

    drop_rate = 0.5  # params.drop

    out_x, out_ei, out_et = gnn_dropout(
        (x, edge_index, edge_type), rate=drop_rate, seed=1234, training=True
    )
    jax.block_until_ready(out_x)
    jax.block_until_ready(out_ei)
    jax.block_until_ready(out_et)

    # Sanity: surviving elements equal x / (1 - p); dropped elements are 0.
    scaled = x / (1.0 - drop_rate)
    is_zero = jnp.isclose(out_x, 0.0)
    is_scaled = jnp.isclose(out_x, scaled, rtol=1e-6, atol=1e-6)
    ok_vals = bool(jnp.all(is_zero | is_scaled))
    # Mask is neither all-drop nor all-keep (p=0.5 over 256 elements).
    ok_mix = bool(jnp.any(is_zero)) and bool(jnp.any(~is_zero))
    ok_pass = bool(jnp.all(out_ei == edge_index)) and bool(jnp.all(out_et == edge_type))
    assert ok_vals and ok_mix and ok_pass, "dropout semantics check failed"

    print("KERNEL_OK")
</pallas_src>

<mosaic_0001>
module attributes {stable_mosaic.version = 11 : i64} {
  func.func @_dropout_kernel(%arg0: i32, %arg1: memref<1xi32, #tpu.memory_space<smem>>, %arg2: memref<1x512xf32, #tpu.memory_space<vmem>>, %arg3: memref<1x512xf32, #tpu.memory_space<vmem>>) attributes {dimension_semantics = [#tpu.dimension_semantics<parallel>], iteration_bounds = array<i64: 1>, scalar_prefetch = 1 : i64, scratch_operands = 0 : i64, tpu.core_type = #tpu.core_type<tc>, window_params = [{transform_indices = @transform_0, window_bounds = array<i64: 1, 512>}, {transform_indices = @transform_1, window_bounds = array<i64: 1, 512>}]} {
    %0 = tpu.iota {dimensions = array<i32: 0>} : vector<1x512xi32>
    %1 = tpu.iota {dimensions = array<i32: 1>} : vector<1x512xi32>
    %c1_i32 = arith.constant 1 : i32
    %2 = arith.muli %arg0, %c1_i32 : i32
    %3 = vector.broadcast %2 : i32 to vector<1x512xi32>
    %4 = arith.addi %3, %0 : vector<1x512xi32>
    %c512_i32 = arith.constant 512 : i32
    %5 = vector.broadcast %c512_i32 : i32 to vector<1x512xi32>
    %6 = arith.muli %4, %5 : vector<1x512xi32>
    %7 = arith.addi %6, %1 : vector<1x512xi32>
    %c0 = arith.constant 0 : index
    %8 = memref.load %arg1[%c0] : memref<1xi32, #tpu.memory_space<smem>>
    %c-1640531535_i32 = arith.constant -1640531535 : i32
    %9 = arith.muli %8, %c-1640531535_i32 : i32
    %10 = vector.broadcast %9 : i32 to vector<1x512xi32>
    %11 = arith.addi %7, %10 : vector<1x512xi32>
    %c16_i32 = arith.constant 16 : i32
    %12 = vector.broadcast %c16_i32 : i32 to vector<1x512xi32>
    %13 = arith.shrui %11, %12 : vector<1x512xi32>
    %14 = arith.xori %11, %13 : vector<1x512xi32>
    %c2146121005_i32 = arith.constant 2146121005 : i32
    %15 = vector.broadcast %c2146121005_i32 : i32 to vector<1x512xi32>
    %16 = arith.muli %14, %15 : vector<1x512xi32>
    %c15_i32 = arith.constant 15 : i32
    %17 = vector.broadcast %c15_i32 : i32 to vector<1x512xi32>
    %18 = arith.shrui %16, %17 : vector<1x512xi32>
    %19 = arith.xori %16, %18 : vector<1x512xi32>
    %c-2073254261_i32 = arith.constant -2073254261 : i32
    %20 = vector.broadcast %c-2073254261_i32 : i32 to vector<1x512xi32>
    %21 = arith.muli %19, %20 : vector<1x512xi32>
    %c16_i32_0 = arith.constant 16 : i32
    %22 = vector.broadcast %c16_i32_0 : i32 to vector<1x512xi32>
    %23 = arith.shrui %21, %22 : vector<1x512xi32>
    %24 = arith.xori %21, %23 : vector<1x512xi32>
    %c8_i32 = arith.constant 8 : i32
    %25 = vector.broadcast %c8_i32 : i32 to vector<1x512xi32>
    %26 = arith.shrui %24, %25 : vector<1x512xi32>
    %c8388608_i32 = arith.constant 8388608 : i32
    %27 = vector.broadcast %c8388608_i32 : i32 to vector<1x512xi32>
    %28 = arith.cmpi sge, %26, %27 : vector<1x512xi32>
    %c0_1 = arith.constant 0 : index
    %c0_2 = arith.constant 0 : index
    %29 = vector.load %arg2[%c0_1, %c0_2] : memref<1x512xf32, #tpu.memory_space<vmem>>, vector<1x512xf32>
    %cst = arith.constant 2.000000e+00 : f32
    %30 = vector.broadcast %cst : f32 to vector<1x512xf32>
    %31 = arith.mulf %29, %30 : vector<1x512xf32>
    %cst_3 = arith.constant 0.000000e+00 : f32
    %32 = vector.broadcast %cst_3 : f32 to vector<1x512xf32>
    %33 = arith.select %28, %31, %32 : vector<1x512xi1>, vector<1x512xf32>
    %c0_4 = arith.constant 0 : index
    %c0_5 = arith.constant 0 : index
    %34 = vector.load %arg3[%c0_4, %c0_5] : memref<1x512xf32, #tpu.memory_space<vmem>>, vector<1x512xf32>
    tpu.vector_store %arg3[%c0_4, %c0_5], %33 {strides = array<i32>} : memref<1x512xf32, #tpu.memory_space<vmem>>, vector<1x512xf32>,
    return
  }
  func.func @transform_0(%arg0: i32, %arg1: memref<1xi32, #tpu.memory_space<smem>>) -> (i32, i32) {
    %c0_i32 = arith.constant 0 : i32
    %c0_i32_0 = arith.constant 0 : i32
    return %arg0, %c0_i32 : i32, i32
  }
  func.func @transform_1(%arg0: i32, %arg1: memref<1xi32, #tpu.memory_space<smem>>) -> (i32, i32) {
    %c0_i32 = arith.constant 0 : i32
    %c0_i32_0 = arith.constant 0 : i32
    return %arg0, %c0_i32 : i32, i32
  }
}

</mosaic_0001>

<llo_original>
// kernel: tpu_custom_call.1
$region0: #{tpu_custom_call.1}
  #allocation0 [shape = 'u32[]', space=smem, size = 0x4, offset = 0x4, fixed_abs, tag = 'smem constant byte address 0x4 - core index']
  #allocation1 [shape = 'u32[72,128]{1,0:T(1,128)}', space=vmem, size = 0x9000, scoped, tag = 'internal scratch']
  #allocation2 [shape = 's32[1]{0}', space=sflag, size = 0x4, scoped, tag = 'scoped memory for tpu_custom_call.1']
  #allocation3 [shape = 's32[1]{0:T(128)S(6)}', space=smem, size = 0x200, scoped, tag = 'prefetched SMEM operand 0']
  %s0 = inlined_call_operand.<no memory space> [shape: s32[1], index: 0, kind: input, shape index: {}]
  %s1 = inlined_call_operand.hbm [shape: f32[1,512], index: 1, kind: input, shape index: {}]
  %s2 = inlined_call_operand.hbm [shape: f32[1,512], index: 2, kind: output, shape index: {}]
  %s3 = sld [smem:[#allocation0]]
  $region18: #{tpu_custom_call.1} parent=0
    _
  %s5 = ssub.s32 1, %s3
  %s6 = scalar_select 0, %s5, %s3
  %7 = sst [smem:[#allocation3]] %s0
  $region1: #{tpu_custom_call.1} parent=0
    #allocation4 [shape = 'u8[2048]{0}', space=vmem, size = 0x800, scoped, tag = 'input window, operand 1, single buffered']
    #allocation5 [shape = 's32[1]{0}', space=sflag, size = 0x4, scoped, tag = 'scoped memory for tpu_custom_call.1']
    #allocation6 [shape = 's32[1]{0}', space=sflag, size = 0x4, scoped, tag = 'scoped memory for tpu_custom_call.1']
    #allocation7 [shape = 'u8[2048]{0}', space=vmem, size = 0x800, scoped, tag = 'output window, operand 0, single buffered']
    %8 = vsyncpa [#allocation5], 0
    %9 = vsyncpa [#allocation6], 0
    // Predicated region
    $region2: #{tpu_custom_call.1} parent=1 // pred_check
      _
    $region3: #{tpu_custom_call.1} parent=1 // pred_check_branch
      %11 = sbr.rel (0) target = $region5
    $region4: #{tpu_custom_call.1} parent=1 // pred_region
      %13 = vsyncadd [#allocation5], 0
      %s15 = sshll.u32 %s1, 4
      %s16 = int_to_ptr.hbm [resolvable:$true] %s15
      %s17 = sshll.u32 [#allocation4], 4
      %s18 = int_to_ptr.vmem [resolvable:$true] %s17
      %20 = dma.hbm_to_vmem [thread:$0]  %s16, 64, %s18, [#allocation5]
    $region5: #{tpu_custom_call.1} parent=1 // pred_fallthru
      _
    // Predicated region
    $region6: #{tpu_custom_call.1} parent=1 // pred_check
      _
    $region7: #{tpu_custom_call.1} parent=1 // pred_check_branch
      %22 = sbr.rel (0) target = $region9
    $region8: #{tpu_custom_call.1} parent=1 // pred_region
      %24 = dma.done [#allocation5], 64
    $region9: #{tpu_custom_call.1} parent=1 // pred_fallthru
      _
    %v25 = vlaneseq
    %v26 = vshrl.u32 %v25, 7
    %v27 = vlaneseq
    %v28 = vand.u32 %v27, 127
    %v29 = vadd.s32 %v28, 128
    %v30 = vadd.s32 %v28, 256
    %v31 = vadd.s32 %v28, 384
    %v32 = vstv 0
    %v33 = vadd.s32 %v32, %v26
    %v34 = vmul.u32 %v33, 512
    %v35 = vadd.s32 %v34, %v28
    %v36 = vadd.s32 %v34, %v29
    %v37 = vadd.s32 %v34, %v30
    %v38 = vadd.s32 %v34, %v31
    %s39 = sld [smem:[#allocation3]]
    %s40 = smul.u32 %s39, 2654435761
    %v41 = vstv %s40
    %v42 = vadd.s32 %v35, %v41
    %v43 = vadd.s32 %v36, %v41
    %v44 = vadd.s32 %v37, %v41
    %v45 = vadd.s32 %v38, %v41
    %v46 = vshrl.u32 %v42, 16
    %v47 = vshrl.u32 %v43, 16
    %v48 = vshrl.u32 %v44, 16
    %v49 = vshrl.u32 %v45, 16
    %v50 = vxor.u32 %v42, %v46
    %v51 = vxor.u32 %v43, %v47
    %v52 = vxor.u32 %v44, %v48
    %v53 = vxor.u32 %v45, %v49
    %v54 = vmul.u32 %v50, 2146121005
    %v55 = vmul.u32 %v51, 2146121005
    %v56 = vmul.u32 %v52, 2146121005
    %v57 = vmul.u32 %v53, 2146121005
    %v58 = vshrl.u32 %v54, 15
    %v59 = vshrl.u32 %v55, 15
    %v60 = vshrl.u32 %v56, 15
    %v61 = vshrl.u32 %v57, 15
    %v62 = vxor.u32 %v54, %v58
    %v63 = vxor.u32 %v55, %v59
    %v64 = vxor.u32 %v56, %v60
    %v65 = vxor.u32 %v57, %v61
    %v66 = vmul.u32 %v62, 2221713035
    %v67 = vmul.u32 %v63, 2221713035
    %v68 = vmul.u32 %v64, 2221713035
    %v69 = vmul.u32 %v65, 2221713035
    %v70 = vshrl.u32 %v66, 16
    %v71 = vshrl.u32 %v67, 16
    %v72 = vshrl.u32 %v68, 16
    %v73 = vshrl.u32 %v69, 16
    %v74 = vxor.u32 %v66, %v70
    %v75 = vxor.u32 %v67, %v71
    %v76 = vxor.u32 %v68, %v72
    %v77 = vxor.u32 %v69, %v73
    %v78 = vshrl.u32 %v74, 8
    %v79 = vshrl.u32 %v75, 8
    %v80 = vshrl.u32 %v76, 8
    %v81 = vshrl.u32 %v77, 8
    %vm82 = vcmp.ge.s32.totalorder %v78, 8388608
    %vm83 = vcmp.ge.s32.totalorder %v79, 8388608
    %vm84 = vcmp.ge.s32.totalorder %v80, 8388608
    %vm85 = vcmp.ge.s32.totalorder %v81, 8388608
    %v86 = vld [vmem:[#allocation4] sm:$0xf]
    %v87 = vmul.f32 %v86, 2.0
    %v89 = vperm.slane %v87, 0
    %v90 = vperm.slane %v87, 1
    %v91 = vperm.slane %v87, 2
    %v92 = vperm.slane %v87, 3
    %v97 = vsel %vm82, %v89, 0.0
    %v98 = vsel %vm83, %v90, 0.0
    %v99 = vsel %vm84, %v91, 0.0
    %v100 = vsel %vm85, %v92, 0.0
    %v105 = vrot.slane %v98, 7
    %v106 = vrot.slane %v99, 6
    %v107 = vrot.slane %v100, 5
    %vm108 = vcmask 1040384
    %v109 = vsel %vm108, %v97, %v105
    %vm110 = vcmask 1042434
    %v111 = vsel %vm110, %v106, %v107
    %vm112 = vcmask 1041408
    %v113 = vsel %vm112, %v109, %v111
    %v115 = vlaneseq
    %vm116 = vcmp.ge.s32.totalorder %v115, 0
    %vm117 = vcmp.lt.s32.totalorder %v115, 512
    %vm118 = vmand %vm116, %vm117
    %119 = vst.msk [vmem:[#allocation7] sm:$0xf] %vm118, %v113
    // Predicated region
    $region10: #{tpu_custom_call.1} parent=1 // pred_check
      _
    $region11: #{tpu_custom_call.1} parent=1 // pred_check_branch
      %121 = sbr.rel (0) target = $region13
    $region12: #{tpu_custom_call.1} parent=1 // pred_region
      %123 = vsyncadd [#allocation6], 0
      %s125 = sshll.u32 [#allocation7], 4
      %s126 = int_to_ptr.vmem [resolvable:$true] %s125
      %s127 = sshll.u32 %s2, 4
      %s128 = int_to_ptr.hbm [resolvable:$true] %s127
      %130 = dma.vmem_to_hbm [thread:$0]  %s126, 64, %s128, [#allocation6]
    $region13: #{tpu_custom_call.1} parent=1 // pred_fallthru
      _
    // Predicated region
    $region14: #{tpu_custom_call.1} parent=1 // pred_check
      _
    $region15: #{tpu_custom_call.1} parent=1 // pred_check_branch
      %132 = sbr.rel (0) target = $region17
    $region16: #{tpu_custom_call.1} parent=1 // pred_region
      %134 = dma.done [#allocation6], 64
    $region17: #{tpu_custom_call.1} parent=1 // pred_fallthru
      _
    %135 = vsyncpa [#allocation5], 1
    %136 = vsyncpa [#allocation6], 1

</llo_original>
